<compile_context>
chip_gen: v6e
topology: v6e:2x2x1
jax: 0.10.0
libtpu: 0.0.40
codegen_flags: <defaults>
</compile_context>

<pallas_src>
import functools

import jax
import jax.numpy as jnp
from jax import lax
from jax.experimental import pallas as pl
from jax.experimental.pallas import tpu as pltpu


# ---------------------------------------------------------------------------
# Kernel: one MXU matmul per (batch, Cout-tile, spatial-tile) block.
# ---------------------------------------------------------------------------
def patch_embed_matmul_kernel(cols_ref, w_ref, b_ref, o_ref):
    # cols_ref: (K, tn) bf16   w_ref: (tm, K) bf16   b_ref: (tm, 1) f32
    acc = jnp.dot(w_ref[...], cols_ref[...],
                  preferred_element_type=jnp.float32)        # MXU, f32 accumulate
    o_ref[...] = (acc + b_ref[...]).astype(o_ref.dtype)      # bias add in f32


def _conv_as_matmul(cols, wf, bias, *, out_dtype=jnp.float32,
                    tm_cap=256, tn_cap=2048):
    """cols: (B, K, N), wf: (Cout, K), bias: (Cout,) -> (B, Cout, N)."""
    B, K, N = cols.shape
    Cout = wf.shape[0]
    tm = Cout if Cout <= tm_cap else tm_cap       # multiple of 8, or full dim
    tn = N if N <= tn_cap else tn_cap             # multiple of 128, or full dim
    grid = (B, pl.cdiv(Cout, tm), pl.cdiv(N, tn))

    cbytes = jnp.dtype(cols.dtype).itemsize
    obytes = jnp.dtype(out_dtype).itemsize
    # Double-buffered VMEM footprint of one grid step (+ headroom), explicit
    # so the scoped default (16 MiB on v5e, 32 MiB elsewhere) never truncates
    # buffering; stays well under v7x's 64 MiB physical VMEM.
    footprint = (2 * (K * tn * cbytes + tm * K * cbytes + tm * 128 * 4)
                 + 2 * tm * tn * obytes)
    vmem_limit = int(min(max(2 * footprint, 32 << 20), 56 << 20))

    cost = pl.CostEstimate(
        flops=int(2 * B * Cout * N * K),
        transcendentals=0,
        bytes_accessed=int(cols.size * cbytes + wf.size * cbytes
                           + Cout * 4 + B * Cout * N * obytes))

    return pl.pallas_call(
        patch_embed_matmul_kernel,
        out_shape=jax.ShapeDtypeStruct((B, Cout, N), out_dtype),
        grid=grid,
        in_specs=[
            pl.BlockSpec((None, K, tn), lambda b, i, j: (b, 0, j)),  # patch cols
            pl.BlockSpec((tm, K), lambda b, i, j: (i, 0)),           # weights
            pl.BlockSpec((tm, 1), lambda b, i, j: (i, 0)),           # bias
        ],
        out_specs=pl.BlockSpec((None, tm, tn), lambda b, i, j: (b, i, j)),
        compiler_params=pltpu.CompilerParams(
            dimension_semantics=("parallel", "parallel", "parallel"),
            vmem_limit_bytes=vmem_limit),
        cost_estimate=cost,
    )(cols, wf, bias.reshape(Cout, 1).astype(jnp.float32))


# ---------------------------------------------------------------------------
# Patch gathering (layout only — no arithmetic)
# ---------------------------------------------------------------------------
def _patchify_nonoverlap(x, k):
    """stride == patch, padding == 0: pure reshape/transpose, zero read
    amplification.  Returns (B, Cin*k*k, Ho*Wo) in torch weight-flatten order."""
    B, C, H, W = x.shape
    Ho, Wo = H // k, W // k
    xb = x.reshape(B, C, Ho, k, Wo, k)
    cols = jnp.transpose(xb, (0, 1, 3, 5, 2, 4))          # (B, C, kh, kw, Ho, Wo)
    return cols.reshape(B, C * k * k, Ho * Wo), Ho, Wo


def _patchify_general(x, k, stride, pad):
    """Overlapping-stride fallback (e.g. 7/4/2 stem): gather the k*k taps."""
    B, C, H, W = x.shape
    xp = jnp.pad(x, ((0, 0), (0, 0), (pad, pad), (pad, pad)))
    Ho = (H + 2 * pad - k) // stride + 1
    Wo = (W + 2 * pad - k) // stride + 1
    taps = []
    for i in range(k):
        for j in range(k):
            taps.append(lax.slice(
                xp, (0, 0, i, j),
                (B, C, i + stride * (Ho - 1) + 1, j + stride * (Wo - 1) + 1),
                (1, 1, stride, stride)))                   # (B, C, Ho, Wo)
    cols = jnp.stack(taps, axis=2)                         # (B, C, k*k, Ho, Wo)
    return cols.reshape(B, C * k * k, Ho * Wo), Ho, Wo


# ---------------------------------------------------------------------------
# Forward wrapper (PatchEmbed.forward)
# ---------------------------------------------------------------------------
@functools.partial(jax.jit,
                   static_argnames=("stride", "padding", "compute_dtype",
                                    "out_dtype"))
def patch_embed_forward(x, w, b, *, stride, padding,
                        compute_dtype=jnp.bfloat16, out_dtype=jnp.float32):
    """x: (B, Cin, H, W) f32, w: (Cout, Cin, k, k) f32, b: (Cout,) f32
    Returns (B, Cout, Ho, Wo) — identical semantics to nn.Conv2d + Identity."""
    B, Cin, H, W = x.shape
    Cout, _, kh, kw = w.shape
    assert kh == kw, "square patches only"
    k = kh

    if stride == k and padding == 0 and H % k == 0 and W % k == 0:
        cols, Ho, Wo = _patchify_nonoverlap(x, k)
    else:
        cols, Ho, Wo = _patchify_general(x, k, stride, padding)

    K = Cin * k * k
    # bf16 operands for the MXU (halves input HBM traffic too); f32 accumulation.
    cols = cols.astype(compute_dtype)
    wf = w.reshape(Cout, K).astype(compute_dtype)

    # Pad ragged K up to a multiple of 16 (bf16 sublane pack); zero taps are inert.
    Kp = -(-K // 16) * 16
    if Kp != K:
        cols = jnp.pad(cols, ((0, 0), (0, Kp - K), (0, 0)))
        wf = jnp.pad(wf, ((0, 0), (0, Kp - K)))

    out_flat = _conv_as_matmul(cols, wf, b, out_dtype=out_dtype)  # (B, Cout, Ho*Wo)
    return out_flat.reshape(B, Cout, Ho, Wo)                      # free reshape


# ---------------------------------------------------------------------------
# Pure-JAX reference (for correctness check)
# ---------------------------------------------------------------------------
def patch_embed_reference(x, w, b, *, stride, padding):
    out = lax.conv_general_dilated(
        x, w, window_strides=(stride, stride),
        padding=((padding, padding), (padding, padding)),
        dimension_numbers=("NCHW", "OIHW", "NCHW"),
        precision=lax.Precision.HIGHEST)
    return out + b.reshape(1, -1, 1, 1)


def _check(out, x, w, b, *, stride, padding):
    # Reference sees the same bf16-rounded operands; both accumulate in f32.
    xq = x.astype(jnp.bfloat16).astype(jnp.float32)
    wq = w.astype(jnp.bfloat16).astype(jnp.float32)
    ref = patch_embed_reference(xq, wq, b, stride=stride, padding=padding)
    assert out.shape == ref.shape
    assert bool(jnp.all(jnp.isfinite(out)))
    assert bool(jnp.allclose(out.astype(jnp.float32), ref, atol=1e-3, rtol=1e-3))


# ---------------------------------------------------------------------------
if __name__ == "__main__":
    key = jax.random.PRNGKey(0)
    k1, k2, k3, k4, k5, k6 = jax.random.split(key, 6)

    # --- Config A: canonical PatchEmbed (stride == patch, no padding) ---------
    B, Cin, H, W = 2, 3, 64, 64
    Cout, patch, stride, pad = 128, 8, 8, 0
    x = jax.random.normal(k1, (B, Cin, H, W), jnp.float32)
    w = jax.random.normal(k2, (Cout, Cin, patch, patch), jnp.float32) * 0.05
    b = jax.random.normal(k3, (Cout,), jnp.float32) * 0.1

    out_a = patch_embed_forward(x, w, b, stride=stride, padding=pad)
    out_a = jax.block_until_ready(out_a)
    assert out_a.shape == (B, Cout, H // stride, W // stride)
    _check(out_a, x, w, b, stride=stride, padding=pad)

    # --- Config B: overlapping stem style (patch 7, stride 4, pad 2) ----------
    B2, Cin2, H2, W2 = 2, 3, 32, 32
    Cout2, patch2, stride2, pad2 = 64, 7, 4, 2
    x2 = jax.random.normal(k4, (B2, Cin2, H2, W2), jnp.float32)
    w2 = jax.random.normal(k5, (Cout2, Cin2, patch2, patch2), jnp.float32) * 0.05
    b2 = jax.random.normal(k6, (Cout2,), jnp.float32) * 0.1

    out_b = patch_embed_forward(x2, w2, b2, stride=stride2, padding=pad2)
    out_b = jax.block_until_ready(out_b)
    assert out_b.shape == (B2, Cout2, 8, 8)
    _check(out_b, x2, w2, b2, stride=stride2, padding=pad2)

    print("KERNEL_OK")
</pallas_src>

<mosaic_0001>
module attributes {stable_mosaic.version = 11 : i64} {
  func.func @patch_embed_matmul_kernel(%arg0: i32, %arg1: i32, %arg2: i32, %arg3: memref<1x192x64xbf16, #tpu.memory_space<vmem>>, %arg4: memref<128x192xbf16, #tpu.memory_space<vmem>>, %arg5: memref<128x1xf32, #tpu.memory_space<vmem>>, %arg6: memref<1x128x64xf32, #tpu.memory_space<vmem>>) attributes {dimension_semantics = [#tpu.dimension_semantics<parallel>, #tpu.dimension_semantics<parallel>, #tpu.dimension_semantics<parallel>], iteration_bounds = array<i64: 2, 1, 1>, scalar_prefetch = 0 : i64, scratch_operands = 0 : i64, tpu.core_type = #tpu.core_type<tc>, window_params = [{transform_indices = @transform_0, window_bounds = array<i64: 1, 192, 64>}, {transform_indices = @transform_1, window_bounds = array<i64: 128, 192>}, {transform_indices = @transform_2, window_bounds = array<i64: 128, 1>}, {transform_indices = @transform_3, window_bounds = array<i64: 1, 128, 64>}]} {
    %c0 = arith.constant 0 : index
    %c0_0 = arith.constant 0 : index
    %0 = vector.load %arg4[%c0, %c0_0] : memref<128x192xbf16, #tpu.memory_space<vmem>>, vector<128x192xbf16>
    %c0_1 = arith.constant 0 : index
    %c0_2 = arith.constant 0 : index
    %c0_3 = arith.constant 0 : index
    %1 = vector.load %arg3[%c0_1, %c0_2, %c0_3] : memref<1x192x64xbf16, #tpu.memory_space<vmem>>, vector<1x192x64xbf16>
    %2 = vector.shape_cast %1 : vector<1x192x64xbf16> to vector<192x64xbf16>
    %cst = arith.constant dense<0.000000e+00> : vector<128x64xf32>
    %3 = tpu.matmul %0, %2, %cst {dimension_numbers = #tpu.dot_dimension_numbers<[1], [0], [0], [1], [0, 0, 1, 1], [], []>} : vector<128x192xbf16>, vector<192x64xbf16>, vector<128x64xf32> -> vector<128x64xf32>
    %c0_4 = arith.constant 0 : index
    %c0_5 = arith.constant 0 : index
    %4 = vector.load %arg5[%c0_4, %c0_5] : memref<128x1xf32, #tpu.memory_space<vmem>>, vector<128x1xf32>
    %5 = vector.broadcast %4 : vector<128x1xf32> to vector<128x64xf32>
    %6 = arith.addf %3, %5 : vector<128x64xf32>
    %c0_6 = arith.constant 0 : index
    %c0_7 = arith.constant 0 : index
    %c0_8 = arith.constant 0 : index
    %7 = vector.load %arg6[%c0_6, %c0_7, %c0_8] : memref<1x128x64xf32, #tpu.memory_space<vmem>>, vector<1x128x64xf32>
    %8 = vector.shape_cast %7 : vector<1x128x64xf32> to vector<128x64xf32>
    %9 = vector.shape_cast %6 : vector<128x64xf32> to vector<1x128x64xf32>
    tpu.vector_store %arg6[%c0_6, %c0_7, %c0_8], %9 {strides = array<i32>} : memref<1x128x64xf32, #tpu.memory_space<vmem>>, vector<1x128x64xf32>,
    return
  }
  func.func @transform_0(%arg0: i32, %arg1: i32, %arg2: i32) -> (i32, i32, i32) {
    %c0_i32 = arith.constant 0 : i32
    %c0_i32_0 = arith.constant 0 : i32
    return %arg0, %c0_i32, %arg2 : i32, i32, i32
  }
  func.func @transform_1(%arg0: i32, %arg1: i32, %arg2: i32) -> (i32, i32) {
    %c0_i32 = arith.constant 0 : i32
    %c0_i32_0 = arith.constant 0 : i32
    return %arg1, %c0_i32 : i32, i32
  }
  func.func @transform_2(%arg0: i32, %arg1: i32, %arg2: i32) -> (i32, i32) {
    %c0_i32 = arith.constant 0 : i32
    %c0_i32_0 = arith.constant 0 : i32
    return %arg1, %c0_i32 : i32, i32
  }
  func.func @transform_3(%arg0: i32, %arg1: i32, %arg2: i32) -> (i32, i32, i32) {
    %c0_i32 = arith.constant 0 : i32
    return %arg0, %arg1, %arg2 : i32, i32, i32
  }
}

</mosaic_0001>

<llo_original>
// kernel: patch_embed_forward.1
$region0: #{patch_embed_forward.1}
  #allocation0 [shape = 'u32[]', space=smem, size = 0x4, offset = 0x4, fixed_abs, tag = 'smem constant byte address 0x4 - core index']
  #allocation1 [shape = 'u32[144,128]{1,0:T(1,128)}', space=vmem, size = 0x12000, scoped, tag = 'internal scratch']
  %s0 = inlined_call_operand.vmem [shape: bf16[2,192,64], index: 0, kind: input, shape index: {}]
  %s1 = inlined_call_operand.vmem [shape: bf16[128,192], index: 1, kind: input, shape index: {}]
  %s2 = inlined_call_operand.vmem [shape: f32[128,1], index: 2, kind: input, shape index: {}]
  %s3 = inlined_call_operand.vmem [shape: f32[2,128,64], index: 3, kind: output, shape index: {}]
  %s4 = sld [smem:[#allocation0]]
  $region45: #{patch_embed_forward.1} parent=0
    _
  %s6 = ssub.s32 1, %s4
  %s7 = scalar_select 0, %s6, %s4
  loop: start=0, step=1, limit=4
  $region2: #{patch_embed_forward.1} parent=0 // loop_pre_header
    _
  $region3: #{patch_embed_forward.1} parent=0 // loop_header
    %s9 = sphi 0, %s13
    %p10 = scmp.ge.s32.totalorder %s9, 4
    %s16 = sphi 0, %s35
    %s17 = sphi 0, %s31
    %s18 = sphi 0, %s27
    %s19 = sphi 0, %s16
    %s20 = sphi 0, %s17
    %s21 = sphi 0, %s18
    %s22 = sphi 0, %s19
    %s23 = sphi 0, %s20
    %s24 = sphi 0, %s21
    %s40 = sphi 0, %s42
    %s43 = sphi 0, %s40
    %s44 = sphi 0, %s43
    %s60 = sphi 0, %s44
    %s66 = sphi 0, %s68
    %s69 = sphi 0, %s66
    %s70 = sphi 0, %s69
    %s86 = sphi 0, %s70
    %s92 = sphi 0, %s94
    %s95 = sphi 0, %s92
    %s96 = sphi 0, %s95
    %s112 = sphi 0, %s96
    %s122 = sphi 0, %s124
    %s125 = sphi 0, %s122
    %s126 = sphi 0, %s125
    %s142 = sphi 0, %s126
  $region4: #{patch_embed_forward.1} parent=0 // loop_header_branch
    %12 = sbr.rel (%p10) target = $region8
  $region5: #{patch_embed_forward.1} parent=0 // loop_body
    %s14 = ssub.s32 %s9, 1
    %s15 = ssub.s32 %s9, 2
    %s25 = sadd.s32 1, %s18
    %p26 = scmp.ge.s32.totalorder %s25, 1
    %s27 = scalar_select %p26, 0, %s25
    %s28 = sadd.s32 1, %s17
    %s29 = scalar_select %p26, %s28, %s17
    %p30 = scmp.ge.s32.totalorder %s29, 1
    %s31 = scalar_select %p30, 0, %s29
    %s32 = sadd.s32 1, %s16
    %s33 = scalar_select %p30, %s32, %s16
    %p34 = scmp.ge.s32.totalorder %s33, 2
    %s35 = scalar_select %p34, 0, %s33
    %s36 = ssub.s32 %s16, %s35
    %s37 = ssub.s32 %s18, %s27
    %s38 = sor.u32 %s36, %s37
    %p39 = scmp.eq.s32.totalorder %s38, 0
    %s41 = sadd.s32 %s40, 1
    %s42 = scalar_select %p39, %s40, %s41
    %p45 = pneg %p39
    %p46 = scmp.eq.s32.totalorder %s9, 1
    %p47 = por %p45, %p46
    %p48 = scmp.ne.s32.totalorder %s40, %s43
    %p49 = scmp.eq.s32.totalorder %s9, 0
    %p50 = por %p48, %p49
    %p51 = scmp.ne.s32.totalorder %s40, %s43
    %p52 = scmp.eq.s32.totalorder %s14, 1
    %p53 = por %p51, %p52
    %p54 = scmp.ne.s32.totalorder %s43, %s44
    %p55 = scmp.eq.s32.totalorder %s14, 0
    %p56 = por %p54, %p55
    %p57 = scmp.ne.s32.totalorder %s43, %s44
    %p58 = scmp.eq.s32.totalorder %s15, 1
    %p59 = por %p57, %p58
    %p61 = scmp.ne.s32.totalorder %s44, %s60
    %p62 = scmp.eq.s32.totalorder %s15, 0
    %p63 = por %p61, %p62
    %s64 = ssub.s32 %s17, %s31
    %p65 = scmp.eq.s32.totalorder %s64, 0
    %s67 = sadd.s32 %s66, 1
    %s68 = scalar_select %p65, %s66, %s67
    %p71 = pneg %p65
    %p72 = scmp.eq.s32.totalorder %s9, 1
    %p73 = por %p71, %p72
    %p74 = scmp.ne.s32.totalorder %s66, %s69
    %p75 = scmp.eq.s32.totalorder %s9, 0
    %p76 = por %p74, %p75
    %p77 = scmp.ne.s32.totalorder %s66, %s69
    %p78 = scmp.eq.s32.totalorder %s14, 1
    %p79 = por %p77, %p78
    %p80 = scmp.ne.s32.totalorder %s69, %s70
    %p81 = scmp.eq.s32.totalorder %s14, 0
    %p82 = por %p80, %p81
    %p83 = scmp.ne.s32.totalorder %s69, %s70
    %p84 = scmp.eq.s32.totalorder %s15, 1
    %p85 = por %p83, %p84
    %p87 = scmp.ne.s32.totalorder %s70, %s86
    %p88 = scmp.eq.s32.totalorder %s15, 0
    %p89 = por %p87, %p88
    %s90 = ssub.s32 %s17, %s31
    %p91 = scmp.eq.s32.totalorder %s90, 0
    %s93 = sadd.s32 %s92, 1
    %s94 = scalar_select %p91, %s92, %s93
    %p97 = pneg %p91
    %p98 = scmp.eq.s32.totalorder %s9, 1
    %p99 = por %p97, %p98
    %p100 = scmp.ne.s32.totalorder %s92, %s95
    %p101 = scmp.eq.s32.totalorder %s9, 0
    %p102 = por %p100, %p101
    %p103 = scmp.ne.s32.totalorder %s92, %s95
    %p104 = scmp.eq.s32.totalorder %s14, 1
    %p105 = por %p103, %p104
    %p106 = scmp.ne.s32.totalorder %s95, %s96
    %p107 = scmp.eq.s32.totalorder %s14, 0
    %p108 = por %p106, %p107
    %p109 = scmp.ne.s32.totalorder %s95, %s96
    %p110 = scmp.eq.s32.totalorder %s15, 1
    %p111 = por %p109, %p110
    %p113 = scmp.ne.s32.totalorder %s96, %s112
    %p114 = scmp.eq.s32.totalorder %s15, 0
    %p115 = por %p113, %p114
    %s116 = ssub.s32 %s16, %s35
    %s117 = ssub.s32 %s17, %s31
    %s118 = sor.u32 %s116, %s117
    %s119 = ssub.s32 %s18, %s27
    %s120 = sor.u32 %s118, %s119
    %p121 = scmp.eq.s32.totalorder %s120, 0
    %s123 = sadd.s32 %s122, 1
    %s124 = scalar_select %p121, %s122, %s123
    %p127 = pneg %p121
    %p128 = scmp.eq.s32.totalorder %s9, 1
    %p129 = por %p127, %p128
    %p130 = scmp.ne.s32.totalorder %s122, %s125
    %p131 = scmp.eq.s32.totalorder %s9, 0
    %p132 = por %p130, %p131
    %p133 = scmp.ne.s32.totalorder %s122, %s125
    %p134 = scmp.eq.s32.totalorder %s14, 1
    %p135 = por %p133, %p134
    %p136 = scmp.ne.s32.totalorder %s125, %s126
    %p137 = scmp.eq.s32.totalorder %s14, 0
    %p138 = por %p136, %p137
    %p139 = scmp.ne.s32.totalorder %s125, %s126
    %p140 = scmp.eq.s32.totalorder %s15, 1
    %p141 = por %p139, %p140
    %p143 = scmp.ne.s32.totalorder %s126, %s142
    %p144 = scmp.eq.s32.totalorder %s15, 0
    %p145 = por %p143, %p144
    %p146 = scmp.le.s32.totalorder 1, %s9
    %p147 = scmp.lt.s32.totalorder %s9, 3
    %p148 = pnand %p146, %p147
    %p149 = pneg %p148
    // Predicated region
    $region9: #{patch_embed_forward.1} parent=5 // pred_check
      _
    $region10: #{patch_embed_forward.1} parent=5 // pred_check_branch
      %151 = sbr.rel (%p148) target = $region12
    $region11: #{patch_embed_forward.1} parent=5 // pred_region
      %s152 = ssub.s32 %s9, 1
      // Predicated region
      $region13: #{patch_embed_forward.1} parent=11 // pred_check
        %p153 = pneg %p82
      $region14: #{patch_embed_forward.1} parent=11 // pred_check_branch
        %155 = sbr.rel (%p153) target = $region16
      $region15: #{patch_embed_forward.1} parent=11 // pred_region
        %s156 = smul.u32 16, %s20
        %p157 = scmp.lt.s32.totalorder %s156, 15
        %s158 = scalar_select %p157, %s156, 15
        %s159 = smul.addr %s158, 2
        %s160 = smul.addr %s159, 4
        %s161 = scalar_lea.vmem %s1, %s160
        %s162 = smul.u32 16, %s20
      $region16: #{patch_embed_forward.1} parent=11 // pred_fallthru
        _
      // Predicated region
      $region17: #{patch_embed_forward.1} parent=11 // pred_check
        %p163 = pneg %p108
      $region18: #{patch_embed_forward.1} parent=11 // pred_check_branch
        %165 = sbr.rel (%p163) target = $region20
      $region19: #{patch_embed_forward.1} parent=11 // pred_region
        %s166 = smul.u32 16, %s20
        %p167 = scmp.lt.s32.totalorder %s166, 15
        %s168 = scalar_select %p167, %s166, 15
        %s169 = smul.addr %s168, 8
        %s170 = scalar_lea.vmem %s2, %s169
        %s171 = smul.u32 16, %s20
      $region20: #{patch_embed_forward.1} parent=11 // pred_fallthru
        _
    $region12: #{patch_embed_forward.1} parent=5 // pred_fallthru
      _
    %p172 = scmp.lt.s32.totalorder %s9, 2
    // Predicated region
    $region21: #{patch_embed_forward.1} parent=5 // pred_check
      %p173 = pneg %p172
    $region22: #{patch_embed_forward.1} parent=5 // pred_check_branch
      %175 = sbr.rel (%p173) target = $region24
    $region23: #{patch_embed_forward.1} parent=5 // pred_region
      // Predicated region
      $region25: #{patch_embed_forward.1} parent=23 // pred_check
        %p176 = pneg %p50
      $region26: #{patch_embed_forward.1} parent=23 // pred_check_branch
        %178 = sbr.rel (%p176) target = $region28
      $region27: #{patch_embed_forward.1} parent=23 // pred_region
        %p179 = scmp.lt.s32.totalorder %s16, 1
        %s180 = scalar_select %p179, %s16, 1
        %p181 = scmp.lt.s32.totalorder %s18, 0
        %s182 = scalar_select %p181, %s18, 0
        %s183 = smul.addr %s180, 24
        %s184 = sadd.s32 %s182, %s183
        %s185 = smul.addr %s184, 4
        %s186 = scalar_lea.vmem %s0, %s185
      $region28: #{patch_embed_forward.1} parent=23 // pred_fallthru
        _
    $region24: #{patch_embed_forward.1} parent=5 // pred_fallthru
      _
    %p187 = scmp.le.s32.totalorder 1, %s9
    %p188 = scmp.lt.s32.totalorder %s9, 3
    %p189 = pnand %p187, %p188
    %p190 = pneg %p189
    // Predicated region
    $region29: #{patch_embed_forward.1} parent=5 // pred_check
      _
    $region30: #{patch_embed_forward.1} parent=5 // pred_check_branch
      %192 = sbr.rel (%p189) target = $region32
    $region31: #{patch_embed_forward.1} parent=5 // pred_region
      %s193 = ssub.s32 %s9, 1
      %p194 = scmp.lt.s32.totalorder %s19, 1
      %s195 = scalar_select %p194, %s19, 1
      %p196 = scmp.lt.s32.totalorder %s21, 0
      %s197 = scalar_select %p196, %s21, 0
      %s198 = smul.addr %s195, 24
      %s199 = sadd.s32 %s197, %s198
      %s200 = smul.addr %s199, 4
      %s201 = scalar_lea.vmem %s0, %s200
      %p202 = pneg %p56
      %p203 = pneg %p53
      %s204 = smul.u32 16, %s20
      %p205 = scmp.lt.s32.totalorder %s204, 15
      %s206 = scalar_select %p205, %s204, 15
      %s207 = smul.addr %s206, 2
      %s208 = smul.addr %s207, 4
      %s209 = scalar_lea.vmem %s1, %s208
      %p210 = pneg %p82
      %p211 = pneg %p79
      %s212 = smul.u32 16, %s20
      %p213 = scmp.lt.s32.totalorder %s212, 15
      %s214 = scalar_select %p213, %s212, 15
      %s215 = smul.addr %s214, 8
      %s216 = scalar_lea.vmem %s2, %s215
      %p217 = pneg %p108
      %p218 = pneg %p105
      %p219 = pneg %p138
      %p220 = pneg %p135
      %s221 = smul.u32 16, %s20
      %p222 = scmp.lt.s32.totalorder %s19, 1
      %s223 = scalar_select %p222, %s19, 1
      %p224 = scmp.lt.s32.totalorder %s221, 15
      %s225 = scalar_select %p224, %s221, 15
      %p226 = scmp.lt.s32.totalorder %s21, 0
      %s227 = scalar_select %p226, %s21, 0
      %s228 = sadd.s32 %s227, %s225
      %s229 = smul.addr %s223, 16
      %s230 = sadd.s32 %s228, %s229
      %s231 = smul.addr %s230, 8
      %s232 = scalar_lea.vmem %s3, %s231
      %p233 = scmp.lt.s32.totalorder %s19, 1
      %s234 = scalar_select %p233, %s19, 1
      %p235 = scmp.lt.s32.totalorder %s21, 0
      %s236 = scalar_select %p235, %s21, 0
      %s237 = smul.addr %s234, 24
      %s238 = sadd.s32 %s236, %s237
      %s239 = smul.addr %s238, 4
      %s240 = scalar_lea.vmem %s0, %s239
      %s241 = smul.u32 16, %s20
      %p242 = scmp.lt.s32.totalorder %s241, 15
      %s243 = scalar_select %p242, %s241, 15
      %s244 = smul.addr %s243, 2
      %s245 = smul.addr %s244, 4
      %s246 = scalar_lea.vmem %s1, %s245
      %s247 = smul.u32 16, %s20
      %s248 = smul.u32 16, %s20
      %p249 = scmp.lt.s32.totalorder %s248, 15
      %s250 = scalar_select %p249, %s248, 15
      %s251 = smul.addr %s250, 8
      %s252 = scalar_lea.vmem %s2, %s251
      %s253 = smul.u32 16, %s20
      %s254 = smul.u32 16, %s20
      %p255 = scmp.lt.s32.totalorder %s19, 1
      %s256 = scalar_select %p255, %s19, 1
      %p257 = scmp.lt.s32.totalorder %s254, 15
      %s258 = scalar_select %p257, %s254, 15
      %p259 = scmp.lt.s32.totalorder %s21, 0
      %s260 = scalar_select %p259, %s21, 0
      %s261 = sadd.s32 %s260, %s258
      %s262 = smul.addr %s256, 16
      %s263 = sadd.s32 %s261, %s262
      %s264 = smul.addr %s263, 8
      %s265 = scalar_lea.vmem %s3, %s264
      %s266 = smul.u32 16, %s20
      %v268 = vld [vmem:[%s246] sm:$0xff]
      %v269 = vld [vmem:[%s246 + $0x8] sm:$0xff]
      %v270 = vld [vmem:[%s246 + $0x10] sm:$0xff]
      %v271 = vld [vmem:[%s246 + $0x18] sm:$0xff]
      %v272 = vld [vmem:[%s246 + $0x20] sm:$0xff]
      %v273 = vld [vmem:[%s246 + $0x28] sm:$0xff]
      %v274 = vld [vmem:[%s246 + $0x30] sm:$0xff]
      %v275 = vld [vmem:[%s246 + $0x38] sm:$0xff]
      %v276 = vld [vmem:[%s246 + $0x40] sm:$0xff]
      %v277 = vld [vmem:[%s246 + $0x48] sm:$0xff]
      %v278 = vld [vmem:[%s246 + $0x50] sm:$0xff]
      %v279 = vld [vmem:[%s246 + $0x58] sm:$0xff]
      %v280 = vld [vmem:[%s246 + $0x60] sm:$0xff]
      %v281 = vld [vmem:[%s246 + $0x68] sm:$0xff]
      %v282 = vld [vmem:[%s246 + $0x70] sm:$0xff]
      %v283 = vld [vmem:[%s246 + $0x78] sm:$0xff]
      %v284 = vld [vmem:[%s240] sm:$0xf]
      %v285 = vld [vmem:[%s240 + $0x4] sm:$0xf]
      %v286 = vld [vmem:[%s240 + $0x8] sm:$0xf]
      %v287 = vld [vmem:[%s240 + $0xc] sm:$0xf]
      %v288 = vld [vmem:[%s240 + $0x10] sm:$0xf]
      %v289 = vld [vmem:[%s240 + $0x14] sm:$0xf]
      %v290 = vld [vmem:[%s240 + $0x18] sm:$0xf]
      %v291 = vld [vmem:[%s240 + $0x1c] sm:$0xf]
      %v292 = vld [vmem:[%s240 + $0x20] sm:$0xf]
      %v293 = vld [vmem:[%s240 + $0x24] sm:$0xf]
      %v294 = vld [vmem:[%s240 + $0x28] sm:$0xf]
      %v295 = vld [vmem:[%s240 + $0x2c] sm:$0xf]
      %v296 = vld [vmem:[%s240 + $0x30] sm:$0xf]
      %v297 = vld [vmem:[%s240 + $0x34] sm:$0xf]
      %v298 = vld [vmem:[%s240 + $0x38] sm:$0xf]
      %v299 = vld [vmem:[%s240 + $0x3c] sm:$0xf]
      %v300 = vld [vmem:[%s240 + $0x40] sm:$0xf]
      %v301 = vld [vmem:[%s240 + $0x44] sm:$0xf]
      %v302 = vld [vmem:[%s240 + $0x48] sm:$0xf]
      %v303 = vld [vmem:[%s240 + $0x4c] sm:$0xf]
      %v304 = vld [vmem:[%s240 + $0x50] sm:$0xf]
      %v305 = vld [vmem:[%s240 + $0x54] sm:$0xf]
      %v306 = vld [vmem:[%s240 + $0x58] sm:$0xf]
      %v307 = vld [vmem:[%s240 + $0x5c] sm:$0xf]
      %v308 = vld [vmem:[%s252] sm:$0xff]
      %v309 = vld [vmem:[%s252 + $0x8] sm:$0xff]
      %v310 = vld [vmem:[%s252 + $0x10] sm:$0xff]
      %v311 = vld [vmem:[%s252 + $0x18] sm:$0xff]
      %v312 = vld [vmem:[%s252 + $0x20] sm:$0xff]
      %v313 = vld [vmem:[%s252 + $0x28] sm:$0xff]
      %v314 = vld [vmem:[%s252 + $0x30] sm:$0xff]
      %v315 = vld [vmem:[%s252 + $0x38] sm:$0xff]
      %v316 = vld [vmem:[%s252 + $0x40] sm:$0xff]
      %v317 = vld [vmem:[%s252 + $0x48] sm:$0xff]
      %v318 = vld [vmem:[%s252 + $0x50] sm:$0xff]
      %v319 = vld [vmem:[%s252 + $0x58] sm:$0xff]
      %v320 = vld [vmem:[%s252 + $0x60] sm:$0xff]
      %v321 = vld [vmem:[%s252 + $0x68] sm:$0xff]
      %v322 = vld [vmem:[%s252 + $0x70] sm:$0xff]
      %v323 = vld [vmem:[%s252 + $0x78] sm:$0xff]
      %325 = vset.pattern.permute.xlu0 0
      %326 = vperm.xlu0 %325, %v308
      %v327 = vpop.permute.xlu0 %326
      %330 = vset.pattern.permute.xlu0 0
      %331 = vperm.xlu0 %330, %v309
      %v332 = vpop.permute.xlu0 %331
      %335 = vset.pattern.permute.xlu0 0
      %336 = vperm.xlu0 %335, %v310
      %v337 = vpop.permute.xlu0 %336
      %340 = vset.pattern.permute.xlu0 0
      %341 = vperm.xlu0 %340, %v311
      %v342 = vpop.permute.xlu0 %341
      %345 = vset.pattern.permute.xlu0 0
      %346 = vperm.xlu0 %345, %v312
      %v347 = vpop.permute.xlu0 %346
      %350 = vset.pattern.permute.xlu0 0
      %351 = vperm.xlu0 %350, %v313
      %v352 = vpop.permute.xlu0 %351
      %355 = vset.pattern.permute.xlu0 0
      %356 = vperm.xlu0 %355, %v314
      %v357 = vpop.permute.xlu0 %356
      %360 = vset.pattern.permute.xlu0 0
      %361 = vperm.xlu0 %360, %v315
      %v362 = vpop.permute.xlu0 %361
      %365 = vset.pattern.permute.xlu0 0
      %366 = vperm.xlu0 %365, %v316
      %v367 = vpop.permute.xlu0 %366
      %370 = vset.pattern.permute.xlu0 0
      %371 = vperm.xlu0 %370, %v317
      %v372 = vpop.permute.xlu0 %371
      %375 = vset.pattern.permute.xlu0 0
      %376 = vperm.xlu0 %375, %v318
      %v377 = vpop.permute.xlu0 %376
      %380 = vset.pattern.permute.xlu0 0
      %381 = vperm.xlu0 %380, %v319
      %v382 = vpop.permute.xlu0 %381
      %385 = vset.pattern.permute.xlu0 0
      %386 = vperm.xlu0 %385, %v320
      %v387 = vpop.permute.xlu0 %386
      %390 = vset.pattern.permute.xlu0 0
      %391 = vperm.xlu0 %390, %v321
      %v392 = vpop.permute.xlu0 %391
      %395 = vset.pattern.permute.xlu0 0
      %396 = vperm.xlu0 %395, %v322
      %v397 = vpop.permute.xlu0 %396
      %400 = vset.pattern.permute.xlu0 0
      %401 = vperm.xlu0 %400, %v323
      %v402 = vpop.permute.xlu0 %401
      %v420 = vunpack.c.l.b16 %v268
      %v421 = vunpack.c.h.b16 %v268
      %v422 = vunpack.c.l.b16 %v269
      %v423 = vunpack.c.h.b16 %v269
      %v424 = vunpack.c.l.b16 %v270
      %v425 = vunpack.c.h.b16 %v270
      %v426 = vunpack.c.l.b16 %v271
      %v427 = vunpack.c.h.b16 %v271
      %v428 = vunpack.c.l.b16 %v272
      %v429 = vunpack.c.h.b16 %v272
      %v430 = vunpack.c.l.b16 %v273
      %v431 = vunpack.c.h.b16 %v273
      %v432 = vunpack.c.l.b16 %v274
      %v433 = vunpack.c.h.b16 %v274
      %v434 = vunpack.c.l.b16 %v275
      %v435 = vunpack.c.h.b16 %v275
      %v436 = vunpack.c.l.b16 %v276
      %v437 = vunpack.c.h.b16 %v276
      %v438 = vunpack.c.l.b16 %v277
      %v439 = vunpack.c.h.b16 %v277
      %v440 = vunpack.c.l.b16 %v278
      %v441 = vunpack.c.h.b16 %v278
      %v442 = vunpack.c.l.b16 %v279
      %v443 = vunpack.c.h.b16 %v279
      %v444 = vunpack.c.l.b16 %v280
      %v445 = vunpack.c.h.b16 %v280
      %v446 = vunpack.c.l.b16 %v281
      %v447 = vunpack.c.h.b16 %v281
      %v448 = vunpack.c.l.b16 %v282
      %v449 = vunpack.c.h.b16 %v282
      %v450 = vunpack.c.l.b16 %v283
      %v451 = vunpack.c.h.b16 %v283
      %v452 = vpack.c.b16 %v422, %v420
      %v453 = vpack.c.b16 %v423, %v421
      %v454 = vpack.c.b16 %v426, %v424
      %v455 = vpack.c.b16 %v427, %v425
      %v456 = vpack.c.b16 %v430, %v428
      %v457 = vpack.c.b16 %v431, %v429
      %v458 = vpack.c.b16 %v434, %v432
      %v459 = vpack.c.b16 %v435, %v433
      %v460 = vpack.c.b16 %v438, %v436
      %v461 = vpack.c.b16 %v439, %v437
      %v462 = vpack.c.b16 %v442, %v440
      %v463 = vpack.c.b16 %v443, %v441
      %v464 = vpack.c.b16 %v446, %v444
      %v465 = vpack.c.b16 %v447, %v445
      %v466 = vpack.c.b16 %v450, %v448
      %v467 = vpack.c.b16 %v451, %v449
      %v500 = vunpack.c.l.b16 %v284
      %v501 = vunpack.c.l.b16 %v285
      %v502 = vunpack.c.l.b16 %v286
      %v503 = vunpack.c.l.b16 %v287
      %v504 = vunpack.c.l.b16 %v288
      %v505 = vunpack.c.l.b16 %v289
      %v506 = vunpack.c.l.b16 %v290
      %v507 = vunpack.c.l.b16 %v291
      %v508 = vunpack.c.l.b16 %v292
      %v509 = vunpack.c.l.b16 %v293
      %v510 = vunpack.c.l.b16 %v294
      %v511 = vunpack.c.l.b16 %v295
      %v512 = vunpack.c.l.b16 %v296
      %v513 = vunpack.c.l.b16 %v297
      %v514 = vunpack.c.l.b16 %v298
      %v515 = vunpack.c.l.b16 %v299
      %v516 = vunpack.c.l.b16 %v300
      %v517 = vunpack.c.l.b16 %v301
      %v518 = vunpack.c.l.b16 %v302
      %v519 = vunpack.c.l.b16 %v303
      %v520 = vunpack.c.l.b16 %v304
      %v521 = vunpack.c.l.b16 %v305
      %v522 = vunpack.c.l.b16 %v306
      %v523 = vunpack.c.l.b16 %v307
      %v524 = vpack.c.b16 %v501, %v500
      %v525 = vpack.c.b16 %v503, %v502
      %v526 = vpack.c.b16 %v505, %v504
      %v527 = vpack.c.b16 %v507, %v506
      %v528 = vpack.c.b16 %v509, %v508
      %v529 = vpack.c.b16 %v511, %v510
      %v530 = vpack.c.b16 %v513, %v512
      %v531 = vpack.c.b16 %v515, %v514
      %v532 = vpack.c.b16 %v517, %v516
      %v533 = vpack.c.b16 %v519, %v518
      %v534 = vpack.c.b16 %v521, %v520
      %v535 = vpack.c.b16 %v523, %v522
      %vm548 = vcmask 523264
      %v550 = vsel %vm548, %v453, 0
      %v553 = vsel %vm548, %v455, 0
      %v556 = vsel %vm548, %v457, 0
      %v559 = vsel %vm548, %v459, 0
      %v562 = vsel %vm548, %v461, 0
      %v565 = vsel %vm548, %v463, 0
      %v568 = vsel %vm548, %v465, 0
      %v571 = vsel %vm548, %v467, 0
      %573 = vmatprep.subr.bf16.mxu0 0
      %574 = vmatpush1.bf16.msra.mxu0 %v531
      %575 = vmatprep.subr.bf16.mxu0 0
      %576 = vmatpush1.bf16.msra.mxu0 %v530
      %577 = vmatprep.subr.bf16.mxu0 0
      %578 = vmatpush1.bf16.msra.mxu0 %v529
      %579 = vmatprep.subr.bf16.mxu0 0
      %580 = vmatpush1.bf16.msra.mxu0 %v528
      %581 = vmatprep.subr.bf16.mxu0 0
      %582 = vmatpush1.bf16.msra.mxu0 %v527
      %583 = vmatprep.subr.bf16.mxu0 0
      %584 = vmatpush1.bf16.msra.mxu0 %v526
      %585 = vmatprep.subr.bf16.mxu0 0
      %586 = vmatpush1.bf16.msra.mxu0 %v525
      %587 = vmatprep.subr.bf16.mxu0 0
      %588 = vmatpush1.bf16.msra.mxu0 %v524
      %589 = vmatprep.subr.bf16.mxu0 0
      %590 = vmatpush2.bf16.msra.mxu0 0
      %591 = vmatprep.subr.bf16.mxu0 0
      %592 = vmatpush2.bf16.msra.mxu0 0
      %593 = vmatprep.subr.bf16.mxu0 0
      %594 = vmatpush2.bf16.msra.mxu0 0
      %595 = vmatprep.subr.bf16.mxu0 0
      %596 = vmatpush2.bf16.msra.mxu0 0
      %597 = vmatprep.subr.bf16.mxu0 0
      %598 = vmatpush2.bf16.msra.mxu0 %v535
      %599 = vmatprep.subr.bf16.mxu0 0
      %600 = vmatpush2.bf16.msra.mxu0 %v534
      %601 = vmatprep.subr.bf16.mxu0 0
      %602 = vmatpush2.bf16.msra.mxu0 %v533
      %603 = vmatprep.subr.bf16.mxu0 0
      %604 = vmatpush2.bf16.msra.mxu0 %v532
      %605 = vmatprep.mubr.bf16.mxu0 %v550
      %606 = vmatmul.mubr.bf16.gmra.mxu0 %v452
      %v607 = vpop.f32.mrf.mxu0
      %v608 = vadd.f32 %v327, %v607
      %v609 = vpop.f32.mrf.mxu0
      %v610 = vpop.f32.mrf.mxu0
      %v611 = vadd.f32 %v332, %v610
      %v612 = vpop.f32.mrf.mxu0
      %613 = vmatprep.mubr.bf16.mxu0 %v553
      %614 = vmatmul.mubr.bf16.gmra.mxu0 %v454
      %v615 = vpop.f32.mrf.mxu0
      %v616 = vadd.f32 %v337, %v615
      %v617 = vpop.f32.mrf.mxu0
      %v618 = vpop.f32.mrf.mxu0
      %v619 = vadd.f32 %v342, %v618
      %v620 = vpop.f32.mrf.mxu0
      %621 = vmatprep.mubr.bf16.mxu0 %v556
      %622 = vmatmul.mubr.bf16.gmra.mxu0 %v456
      %v623 = vpop.f32.mrf.mxu0
      %v624 = vadd.f32 %v347, %v623
      %v625 = vpop.f32.mrf.mxu0
      %v626 = vpop.f32.mrf.mxu0
      %v627 = vadd.f32 %v352, %v626
      %v628 = vpop.f32.mrf.mxu0
      %629 = vmatprep.mubr.bf16.mxu0 %v559
      %630 = vmatmul.mubr.bf16.gmra.mxu0 %v458
      %v631 = vpop.f32.mrf.mxu0
      %v632 = vadd.f32 %v357, %v631
      %v633 = vpop.f32.mrf.mxu0
      %v634 = vpop.f32.mrf.mxu0
      %v635 = vadd.f32 %v362, %v634
      %v636 = vpop.f32.mrf.mxu0
      %637 = vmatprep.mubr.bf16.mxu0 %v562
      %638 = vmatmul.mubr.bf16.gmra.mxu0 %v460
      %v639 = vpop.f32.mrf.mxu0
      %v640 = vadd.f32 %v367, %v639
      %v641 = vpop.f32.mrf.mxu0
      %v642 = vpop.f32.mrf.mxu0
      %v643 = vadd.f32 %v372, %v642
      %v644 = vpop.f32.mrf.mxu0
      %645 = vmatprep.mubr.bf16.mxu0 %v565
      %646 = vmatmul.mubr.bf16.gmra.mxu0 %v462
      %v647 = vpop.f32.mrf.mxu0
      %v648 = vadd.f32 %v377, %v647
      %v649 = vpop.f32.mrf.mxu0
      %v650 = vpop.f32.mrf.mxu0
      %v651 = vadd.f32 %v382, %v650
      %v652 = vpop.f32.mrf.mxu0
      %653 = vmatprep.mubr.bf16.mxu0 %v568
      %654 = vmatmul.mubr.bf16.gmra.mxu0 %v464
      %v655 = vpop.f32.mrf.mxu0
      %v656 = vadd.f32 %v387, %v655
      %v657 = vpop.f32.mrf.mxu0
      %v658 = vpop.f32.mrf.mxu0
      %v659 = vadd.f32 %v392, %v658
      %v660 = vpop.f32.mrf.mxu0
      %661 = vmatprep.mubr.bf16.mxu0 %v571
      %662 = vmatmul.mubr.bf16.gmra.mxu0 %v466
      %v663 = vpop.f32.mrf.mxu0
      %v664 = vadd.f32 %v397, %v663
      %v665 = vpop.f32.mrf.mxu0
      %v666 = vpop.f32.mrf.mxu0
      %v667 = vadd.f32 %v402, %v666
      %v668 = vpop.f32.mrf.mxu0
      %669 = vdwg.mxu0
      %670 = vst.msk [vmem:[%s265] sm:$0xff] %vm548, %v608
      %671 = vst.msk [vmem:[%s265 + $0x8] sm:$0xff] %vm548, %v611
      %672 = vst.msk [vmem:[%s265 + $0x10] sm:$0xff] %vm548, %v616
      %673 = vst.msk [vmem:[%s265 + $0x18] sm:$0xff] %vm548, %v619
      %674 = vst.msk [vmem:[%s265 + $0x20] sm:$0xff] %vm548, %v624
      %675 = vst.msk [vmem:[%s265 + $0x28] sm:$0xff] %vm548, %v627
      %676 = vst.msk [vmem:[%s265 + $0x30] sm:$0xff] %vm548, %v632
      %677 = vst.msk [vmem:[%s265 + $0x38] sm:$0xff] %vm548, %v635
      %678 = vst.msk [vmem:[%s265 + $0x40] sm:$0xff] %vm548, %v640
      %679 = vst.msk [vmem:[%s265 + $0x48] sm:$0xff] %vm548, %v643
      %680 = vst.msk [vmem:[%s265 + $0x50] sm:$0xff] %vm548, %v648
      %681 = vst.msk [vmem:[%s265 + $0x58] sm:$0xff] %vm548, %v651
      %682 = vst.msk [vmem:[%s265 + $0x60] sm:$0xff] %vm548, %v656
      %683 = vst.msk [vmem:[%s265 + $0x68] sm:$0xff] %vm548, %v659
      %684 = vst.msk [vmem:[%s265 + $0x70] sm:$0xff] %vm548, %v664
      %685 = vst.msk [vmem:[%s265 + $0x78] sm:$0xff] %vm548, %v667
      %s686 = smul.u32 16, %s20
      %p687 = scmp.lt.s32.totalorder %s19, 1
      %s688 = scalar_select %p687, %s19, 1
      %p689 = scmp.lt.s32.totalorder %s686, 15
      %s690 = scalar_select %p689, %s686, 15
      %p691 = scmp.lt.s32.totalorder %s21, 0
      %s692 = scalar_select %p691, %s21, 0
      %s693 = sadd.s32 %s692, %s690
      %s694 = smul.addr %s688, 16
      %s695 = sadd.s32 %s693, %s694
      %s696 = smul.addr %s695, 8
      %s697 = scalar_lea.vmem %s3, %s696
      // Predicated region
      $region33: #{patch_embed_forward.1} parent=31 // pred_check
        %p698 = pneg %p135
      $region34: #{patch_embed_forward.1} parent=31 // pred_check_branch
        %700 = sbr.rel (%p698) target = $region36
      $region35: #{patch_embed_forward.1} parent=31 // pred_region
        %s701 = smul.u32 16, %s20
      $region36: #{patch_embed_forward.1} parent=31 // pred_fallthru
        _
    $region32: #{patch_embed_forward.1} parent=5 // pred_fallthru
      _
    %p702 = scmp.le.s32.totalorder 2, %s9
    // Predicated region
    $region37: #{patch_embed_forward.1} parent=5 // pred_check
      %p703 = pneg %p702
    $region38: #{patch_embed_forward.1} parent=5 // pred_check_branch
      %705 = sbr.rel (%p703) target = $region40
    $region39: #{patch_embed_forward.1} parent=5 // pred_region
      %s706 = ssub.s32 %s9, 2
      // Predicated region
      $region41: #{patch_embed_forward.1} parent=39 // pred_check
        %p707 = pneg %p141
      $region42: #{patch_embed_forward.1} parent=39 // pred_check_branch
        %709 = sbr.rel (%p707) target = $region44
      $region43: #{patch_embed_forward.1} parent=39 // pred_region
        %s710 = smul.u32 16, %s23
        %p711 = scmp.lt.s32.totalorder %s22, 1
        %s712 = scalar_select %p711, %s22, 1
        %p713 = scmp.lt.s32.totalorder %s710, 15
        %s714 = scalar_select %p713, %s710, 15
        %p715 = scmp.lt.s32.totalorder %s24, 0
        %s716 = scalar_select %p715, %s24, 0
        %s717 = sadd.s32 %s716, %s714
        %s718 = smul.addr %s712, 16
        %s719 = sadd.s32 %s717, %s718
        %s720 = smul.addr %s719, 8
        %s721 = scalar_lea.vmem %s3, %s720
      $region44: #{patch_embed_forward.1} parent=39 // pred_fallthru
        _
    $region40: #{patch_embed_forward.1} parent=5 // pred_fallthru
      _
  $region6: #{patch_embed_forward.1} parent=0 // loop_footer
    %s13 = sadd.s32 1, %s9
  $region7: #{patch_embed_forward.1} parent=0 // loop_footer_branch
    %8 = sbr.rel target = $region3
  $region8: #{patch_embed_forward.1} parent=0 // loop_exit
    _

</llo_original>
